<compile_context>
chip_gen: v7x
topology: tpu7x:2x2x1
jax: 0.10.0
libtpu: 0.0.40
codegen_flags: <defaults>
</compile_context>

<pallas_src>
import functools

import jax
import jax.numpy as jnp
from jax.experimental import pallas as pl
from jax.experimental.pallas import tpu as pltpu


def _targetfc_kernel_mxu(x_ref, w_ref, b_ref, o_ref):
    # x_ref: (TB, C_in, T_HW), w_ref: (TB, C_out, C_in), b_ref: (TB, C_out, 1)
    # o_ref: (TB, C_out, T_HW)
    acc = jnp.einsum(
        "boi,bih->boh", w_ref[...], x_ref[...],
        preferred_element_type=jnp.float32,
    )
    acc = acc + b_ref[...].astype(jnp.float32)          # (TB, C_out, 1) lane broadcast
    o_ref[...] = acc.astype(o_ref.dtype)


def _targetfc_kernel_vpu(x_ref, w_ref, b_ref, o_ref, *, c_in):
    # VPU MAC path for tiny C_in: a few broadcast multiply-adds per output element,
    # which stay hidden under the (HBM-bound) DMA instead of paying MXU padding.
    x = x_ref[...].astype(jnp.float32)                   # (TB, C_in, T_HW)
    w = w_ref[...].astype(jnp.float32)                   # (TB, C_out, C_in)
    acc = jnp.zeros(o_ref.shape, jnp.float32) + b_ref[...].astype(jnp.float32)
    for ci in range(c_in):                               # static, small unrolled loop
        acc = acc + w[:, :, ci:ci + 1] * x[:, ci:ci + 1, :]
    o_ref[...] = acc.astype(o_ref.dtype)


def _vmem_capacity_bytes():
    # Generation-aware VMEM capacity (64 MiB on v7x, 128 MiB on v5e/v6e).
    try:
        return int(pltpu.get_tpu_info().vmem_capacity_bytes)
    except Exception:
        return 128 << 20


def _choose_tiles(B, C_in, C_out, HW, itemsize, budget):
    """Pick (TB, T_HW) so one grid step's per-sample working set fits `budget`."""

    def sample_bytes(th):
        # in + out tiles (native dtype) + f32 accumulator + resident weights/bias.
        return ((C_in + C_out) * th * itemsize
                + C_out * th * 4
                + C_out * C_in * itemsize
                + C_out * itemsize)

    # HW tile: lane axis. Whole HW when modest, otherwise a 128-aligned tile
    # (Pallas masks the ragged tail tile).
    t_hw = HW if HW <= 8192 else 8192
    # Shrink T_HW (128-lane aligned) when even a single sample exceeds the budget
    # (large channel counts) — keeps v7x's 64 MiB VMEM safe.
    while sample_bytes(t_hw) > budget and t_hw > 128:
        t_hw = max(128, ((t_hw // 2) + 127) // 128 * 128)

    # Batch fold: amortise the ~0.35 us per-grid-step overhead when per-sample
    # tiles are small. Ragged last batch block is handled by Pallas masking.
    tb = int(max(1, min(B, budget // max(sample_bytes(t_hw), 1))))
    return tb, t_hw


def target_fc(input_, weight, bias):
    """Pallas equivalent of TargetFC.forward.

    input_: (B, C_in, H, W)
    weight: (B, C_out, C_in, 1, 1)
    bias:   (B, C_out)
    returns (B, C_out, H, W)
    """
    B, C_in, H, W = input_.shape
    Bw, C_out, C_in_w, kH, kW = weight.shape
    assert Bw == B and C_in_w == C_in
    # The PyTorch module's trailing .view only makes sense for 1x1 kernels.
    assert kH == 1 and kW == 1, "TargetFC is a per-sample FC; expects 1x1 kernel"
    assert bias.shape == (B, C_out)

    HW = H * W
    x = input_.reshape(B, C_in, HW)        # free reshape, no transpose
    w = weight[..., 0, 0]                  # (B, C_out, C_in), no transpose
    b3 = bias.reshape(B, C_out, 1)         # C_out on sublanes -> cheap lane broadcast

    itemsize = jnp.dtype(input_.dtype).itemsize
    vmem_cap = _vmem_capacity_bytes()
    # Per-slot budget scaled with VMEM size: ~6 MiB on v7x (64 MiB), ~13 MiB on
    # v5e/v6e (128 MiB) -> bigger blocks where there is room.
    budget = max(2 << 20, min(14 << 20, vmem_cap // 10))
    TB, T_HW = _choose_tiles(B, C_in, C_out, HW, itemsize, budget)
    n_b = pl.cdiv(B, TB)
    n_hw = pl.cdiv(HW, T_HW)

    # VPU MAC path for tiny channel counts, MXU einsum otherwise.
    if C_in <= 16:
        kernel = functools.partial(_targetfc_kernel_vpu, c_in=C_in)
    else:
        kernel = _targetfc_kernel_mxu

    cost = pl.CostEstimate(
        flops=2 * B * HW * C_in * C_out,
        transcendentals=0,
        bytes_accessed=(x.size + w.size + bias.size + B * C_out * HW) * itemsize,
    )

    # Working-set estimate: double-buffered in/out tiles + f32 acc + weights/bias.
    tile_bytes = TB * ((C_in + C_out) * T_HW * itemsize
                       + C_out * T_HW * 4
                       + C_out * C_in * itemsize
                       + C_out * itemsize)
    # Leave headroom for Mosaic internal scratch: never ask for more than 75% of
    # physical VMEM (=> ~48 MiB on v7x, ~96 MiB on v5e/v6e).
    vmem_limit = int(min(max(3 * tile_bytes, 32 << 20), int(vmem_cap * 0.75)))

    out = pl.pallas_call(
        kernel,
        out_shape=jax.ShapeDtypeStruct((B, C_out, HW), input_.dtype),
        grid_spec=pltpu.PrefetchScalarGridSpec(
            num_scalar_prefetch=0,
            grid=(n_b, n_hw),
            in_specs=[
                pl.BlockSpec((TB, C_in, T_HW), lambda b, t: (b, 0, t)),
                pl.BlockSpec((TB, C_out, C_in), lambda b, t: (b, 0, 0)),
                pl.BlockSpec((TB, C_out, 1), lambda b, t: (b, 0, 0)),
            ],
            out_specs=pl.BlockSpec((TB, C_out, T_HW), lambda b, t: (b, 0, t)),
        ),
        compiler_params=pltpu.CompilerParams(
            dimension_semantics=("parallel", "parallel"),
            vmem_limit_bytes=vmem_limit,
        ),
        cost_estimate=cost,
    )(x, w, b3)

    # Back to NCHW (free reshape).
    return out.reshape(B, C_out, H, W)


def target_fc_ref(input_, weight, bias):
    # Pure-JAX reference of the PyTorch forward (grouped 1x1 conv == per-sample FC).
    w = weight[..., 0, 0]                               # (B, C_out, C_in)
    out = jnp.einsum("boc,bchw->bohw", w, input_)       # (B, C_out, H, W)
    return out + bias[:, :, None, None]


if __name__ == "__main__":
    # Small shapes consistent with the module's forward.
    B, C_in, C_out, H, W = 2, 4, 8, 16, 16

    key = jax.random.PRNGKey(0)
    k1, k2, k3 = jax.random.split(key, 3)
    input_ = jax.random.normal(k1, (B, C_in, H, W), dtype=jnp.float32)
    weight = jax.random.normal(k2, (B, C_out, C_in, 1, 1), dtype=jnp.float32) * 0.1
    bias = jax.random.normal(k3, (B, C_out), dtype=jnp.float32) * 0.1

    out = target_fc(input_, weight, bias)
    out = jax.block_until_ready(out)

    ref = target_fc_ref(input_, weight, bias)
    assert out.shape == (B, C_out, H, W)
    assert jnp.allclose(out, ref, atol=1e-5, rtol=1e-5), "mismatch vs reference"

    # Also exercise the ragged-batch (B % TB != 0 handled by masking) and MXU paths
    # at still-small shapes to make sure both code paths run clean.
    B2, C_in2, C_out2 = 3, 32, 24
    ka, kb, kc = jax.random.split(jax.random.PRNGKey(1), 3)
    x2 = jax.random.normal(ka, (B2, C_in2, H, W), dtype=jnp.float32)
    w2 = jax.random.normal(kb, (B2, C_out2, C_in2, 1, 1), dtype=jnp.float32) * 0.1
    b2 = jax.random.normal(kc, (B2, C_out2), dtype=jnp.float32) * 0.1
    out2 = jax.block_until_ready(target_fc(x2, w2, b2))
    ref2 = target_fc_ref(x2, w2, b2)
    assert jnp.allclose(out2, ref2, atol=1e-4, rtol=1e-4), "mismatch vs reference (MXU path)"

    print("KERNEL_OK")
</pallas_src>

<mosaic_0001>
module attributes {stable_mosaic.version = 11 : i64} {
  func.func @_targetfc_kernel_vpu(%arg0: i32, %arg1: i32, %arg2: memref<2x4x256xf32, #tpu.memory_space<vmem>>, %arg3: memref<2x8x4xf32, #tpu.memory_space<vmem>>, %arg4: memref<2x8x1xf32, #tpu.memory_space<vmem>>, %arg5: memref<2x8x256xf32, #tpu.memory_space<vmem>>) attributes {dimension_semantics = [#tpu.dimension_semantics<parallel>, #tpu.dimension_semantics<parallel>], iteration_bounds = array<i64: 1, 1>, scalar_prefetch = 0 : i64, scratch_operands = 0 : i64, tpu.core_type = #tpu.core_type<tc>, window_params = [{transform_indices = @transform_0, window_bounds = array<i64: 2, 4, 256>}, {transform_indices = @transform_1, window_bounds = array<i64: 2, 8, 4>}, {transform_indices = @transform_2, window_bounds = array<i64: 2, 8, 1>}, {transform_indices = @transform_3, window_bounds = array<i64: 2, 8, 256>}]} {
    %c0 = arith.constant 0 : index
    %c0_0 = arith.constant 0 : index
    %c0_1 = arith.constant 0 : index
    %0 = vector.load %arg2[%c0, %c0_0, %c0_1] : memref<2x4x256xf32, #tpu.memory_space<vmem>>, vector<2x4x256xf32>
    %c0_2 = arith.constant 0 : index
    %c0_3 = arith.constant 0 : index
    %c0_4 = arith.constant 0 : index
    %1 = vector.load %arg3[%c0_2, %c0_3, %c0_4] : memref<2x8x4xf32, #tpu.memory_space<vmem>>, vector<2x8x4xf32>
    %cst = arith.constant 0.000000e+00 : f32
    %2 = vector.broadcast %cst : f32 to vector<2x8x256xf32>
    %c0_5 = arith.constant 0 : index
    %c0_6 = arith.constant 0 : index
    %c0_7 = arith.constant 0 : index
    %3 = vector.load %arg4[%c0_5, %c0_6, %c0_7] : memref<2x8x1xf32, #tpu.memory_space<vmem>>, vector<2x8x1xf32>
    %4 = vector.broadcast %3 : vector<2x8x1xf32> to vector<2x8x256xf32>
    %5 = arith.addf %2, %4 : vector<2x8x256xf32>
    %6 = vector.extract_strided_slice %1 {offsets = [0, 0, 0], sizes = [2, 8, 1], strides = [1, 1, 1]} : vector<2x8x4xf32> to vector<2x8x1xf32>
    %7 = vector.extract_strided_slice %0 {offsets = [0, 0, 0], sizes = [2, 1, 256], strides = [1, 1, 1]} : vector<2x4x256xf32> to vector<2x1x256xf32>
    %8 = vector.broadcast %6 : vector<2x8x1xf32> to vector<2x8x256xf32>
    %9 = vector.broadcast %7 : vector<2x1x256xf32> to vector<2x8x256xf32>
    %10 = arith.mulf %8, %9 : vector<2x8x256xf32>
    %11 = arith.addf %5, %10 : vector<2x8x256xf32>
    %12 = vector.extract_strided_slice %1 {offsets = [0, 0, 1], sizes = [2, 8, 1], strides = [1, 1, 1]} : vector<2x8x4xf32> to vector<2x8x1xf32>
    %13 = vector.extract_strided_slice %0 {offsets = [0, 1, 0], sizes = [2, 1, 256], strides = [1, 1, 1]} : vector<2x4x256xf32> to vector<2x1x256xf32>
    %14 = vector.broadcast %12 : vector<2x8x1xf32> to vector<2x8x256xf32>
    %15 = vector.broadcast %13 : vector<2x1x256xf32> to vector<2x8x256xf32>
    %16 = arith.mulf %14, %15 : vector<2x8x256xf32>
    %17 = arith.addf %11, %16 : vector<2x8x256xf32>
    %18 = vector.extract_strided_slice %1 {offsets = [0, 0, 2], sizes = [2, 8, 1], strides = [1, 1, 1]} : vector<2x8x4xf32> to vector<2x8x1xf32>
    %19 = vector.extract_strided_slice %0 {offsets = [0, 2, 0], sizes = [2, 1, 256], strides = [1, 1, 1]} : vector<2x4x256xf32> to vector<2x1x256xf32>
    %20 = vector.broadcast %18 : vector<2x8x1xf32> to vector<2x8x256xf32>
    %21 = vector.broadcast %19 : vector<2x1x256xf32> to vector<2x8x256xf32>
    %22 = arith.mulf %20, %21 : vector<2x8x256xf32>
    %23 = arith.addf %17, %22 : vector<2x8x256xf32>
    %24 = vector.extract_strided_slice %1 {offsets = [0, 0, 3], sizes = [2, 8, 1], strides = [1, 1, 1]} : vector<2x8x4xf32> to vector<2x8x1xf32>
    %25 = vector.extract_strided_slice %0 {offsets = [0, 3, 0], sizes = [2, 1, 256], strides = [1, 1, 1]} : vector<2x4x256xf32> to vector<2x1x256xf32>
    %26 = vector.broadcast %24 : vector<2x8x1xf32> to vector<2x8x256xf32>
    %27 = vector.broadcast %25 : vector<2x1x256xf32> to vector<2x8x256xf32>
    %28 = arith.mulf %26, %27 : vector<2x8x256xf32>
    %29 = arith.addf %23, %28 : vector<2x8x256xf32>
    %c0_8 = arith.constant 0 : index
    %c0_9 = arith.constant 0 : index
    %c0_10 = arith.constant 0 : index
    %30 = vector.load %arg5[%c0_8, %c0_9, %c0_10] : memref<2x8x256xf32, #tpu.memory_space<vmem>>, vector<2x8x256xf32>
    tpu.vector_store %arg5[%c0_8, %c0_9, %c0_10], %29 {strides = array<i32>} : memref<2x8x256xf32, #tpu.memory_space<vmem>>, vector<2x8x256xf32>,
    return
  }
  func.func @transform_0(%arg0: i32, %arg1: i32) -> (i32, i32, i32) {
    %c0_i32 = arith.constant 0 : i32
    %c0_i32_0 = arith.constant 0 : i32
    return %arg0, %c0_i32, %arg1 : i32, i32, i32
  }
  func.func @transform_1(%arg0: i32, %arg1: i32) -> (i32, i32, i32) {
    %c0_i32 = arith.constant 0 : i32
    %c0_i32_0 = arith.constant 0 : i32
    %c0_i32_1 = arith.constant 0 : i32
    return %arg0, %c0_i32, %c0_i32_0 : i32, i32, i32
  }
  func.func @transform_2(%arg0: i32, %arg1: i32) -> (i32, i32, i32) {
    %c0_i32 = arith.constant 0 : i32
    %c0_i32_0 = arith.constant 0 : i32
    %c0_i32_1 = arith.constant 0 : i32
    return %arg0, %c0_i32, %c0_i32_0 : i32, i32, i32
  }
  func.func @transform_3(%arg0: i32, %arg1: i32) -> (i32, i32, i32) {
    %c0_i32 = arith.constant 0 : i32
    %c0_i32_0 = arith.constant 0 : i32
    return %arg0, %c0_i32, %arg1 : i32, i32, i32
  }
}

</mosaic_0001>

<llo_original>
// kernel: tpu_custom_call.1
$region0: #{tpu_custom_call.1}
  #allocation0 [shape = 'u32[]', space=smem, size = 0x4, offset = 0x4, fixed_abs, tag = 'smem constant byte address 0x4 - core index']
  #allocation1 [shape = 'u32[144,128]{1,0:T(1,128)}', space=vmem, size = 0x12000, scoped, tag = 'internal scratch']
  %s0 = inlined_call_operand.vmem [shape: f32[2,4,256], index: 0, kind: input, shape index: {}]
  %s1 = inlined_call_operand.vmem [shape: f32[2,8,4], index: 1, kind: input, shape index: {}]
  %s2 = inlined_call_operand.vmem [shape: f32[2,8,1], index: 2, kind: input, shape index: {}]
  %s3 = inlined_call_operand.hbm [shape: f32[2,8,256], index: 3, kind: output, shape index: {}]
  %s4 = sld [smem:[#allocation0]]
  $region22: #{tpu_custom_call.1} parent=0
    _
  %s6 = ssub.s32 1, %s4
  %s7 = scalar_select 0, %s6, %s4
  $region1: #{tpu_custom_call.1} parent=0
    #allocation2 [shape = 'u8[16384]{0}', space=vmem, size = 0x4000, scoped, tag = 'output window, operand 0, single buffered']
    #allocation3 [shape = 's32[1]{0}', space=sflag, size = 0x4, scoped, tag = 'scoped memory for tpu_custom_call.1']
    %8 = vsyncpa [#allocation3], 0
    // Predicated region
    $region2: #{tpu_custom_call.1} parent=1 // pred_check
      _
    $region3: #{tpu_custom_call.1} parent=1 // pred_check_branch
      %10 = sbr.rel (0) target = $region5
    $region4: #{tpu_custom_call.1} parent=1 // pred_region
      _
    $region5: #{tpu_custom_call.1} parent=1 // pred_fallthru
      _
    // Predicated region
    $region6: #{tpu_custom_call.1} parent=1 // pred_check
      _
    $region7: #{tpu_custom_call.1} parent=1 // pred_check_branch
      %12 = sbr.rel (0) target = $region9
    $region8: #{tpu_custom_call.1} parent=1 // pred_region
      _
    $region9: #{tpu_custom_call.1} parent=1 // pred_fallthru
      _
    // Predicated region
    $region10: #{tpu_custom_call.1} parent=1 // pred_check
      _
    $region11: #{tpu_custom_call.1} parent=1 // pred_check_branch
      %14 = sbr.rel (0) target = $region13
    $region12: #{tpu_custom_call.1} parent=1 // pred_region
      _
    $region13: #{tpu_custom_call.1} parent=1 // pred_fallthru
      _
    %v15 = vld [vmem:[%s0] sm:$0xff]
    %v16 = vld [vmem:[%s0 + $0x8] sm:$0xff]
    %v17 = vld [vmem:[%s1] sm:$0xff]
    %v18 = vld [vmem:[%s1 + $0x8] sm:$0xff]
    %v19 = vld [vmem:[%s2] sm:$0xff]
    %v20 = vld [vmem:[%s2 + $0x8] sm:$0xff]
    %22 = vset.pattern.permute.xlu0 0
    %23 = vperm.xlu0 %22, %v19
    %v24 = vpop.permute.xlu0 %23
    %27 = vset.pattern.permute.xlu0 0
    %28 = vperm.xlu0 %27, %v20
    %v29 = vpop.permute.xlu0 %28
    %v31 = vadd.f32 %v24, 0.0
    %v32 = vadd.f32 %v29, 0.0
    %34 = vset.pattern.permute.xlu0 0
    %35 = vperm.xlu0 %34, %v17
    %v36 = vpop.permute.xlu0 %35
    %39 = vset.pattern.permute.xlu0 0
    %40 = vperm.xlu0 %39, %v18
    %v41 = vpop.permute.xlu0 %40
    %v45 = vlaneseq
    %v46 = vshrl.u32 %v45, 7
    %v47 = vsub.s32 0, %v46
    %v48 = vrot.slane %v15, %v47
    %v49 = vlaneseq
    %v50 = vshrl.u32 %v49, 7
    %v51 = vsub.s32 4, %v50
    %v52 = vrot.slane %v15, %v51
    %v53 = vlaneseq
    %v54 = vshrl.u32 %v53, 7
    %v55 = vsub.s32 0, %v54
    %v56 = vrot.slane %v16, %v55
    %v57 = vlaneseq
    %v58 = vshrl.u32 %v57, 7
    %v59 = vsub.s32 4, %v58
    %v60 = vrot.slane %v16, %v59
    %v65 = vlaneseq
    %v66 = vshrl.u32 %v65, 7
    %v67 = vsub.s32 0, %v66
    %v68 = vrot.slane %v48, %v67
    %v69 = vlaneseq
    %v70 = vshrl.u32 %v69, 7
    %v71 = vsub.s32 0, %v70
    %v72 = vrot.slane %v52, %v71
    %v73 = vlaneseq
    %v74 = vshrl.u32 %v73, 7
    %v75 = vsub.s32 0, %v74
    %v76 = vrot.slane %v56, %v75
    %v77 = vlaneseq
    %v78 = vshrl.u32 %v77, 7
    %v79 = vsub.s32 0, %v78
    %v80 = vrot.slane %v60, %v79
    %v81 = vmul.f32 %v36, %v68
    %v82 = vmul.f32 %v36, %v72
    %v83 = vmul.f32 %v41, %v76
    %v84 = vmul.f32 %v41, %v80
    %v85 = vadd.f32 %v31, %v81
    %v86 = vadd.f32 %v31, %v82
    %v87 = vadd.f32 %v32, %v83
    %v88 = vadd.f32 %v32, %v84
    %89 = vset.pattern.permute.xlu0 1
    %90 = vperm.xlu0 %89, %v17
    %v91 = vpop.permute.xlu0 %90
    %93 = vset.pattern.permute.xlu0 1
    %94 = vperm.xlu0 %93, %v18
    %v95 = vpop.permute.xlu0 %94
    %v97 = vlaneseq
    %v98 = vshrl.u32 %v97, 7
    %v99 = vsub.s32 1, %v98
    %v100 = vrot.slane %v15, %v99
    %v101 = vlaneseq
    %v102 = vshrl.u32 %v101, 7
    %v103 = vsub.s32 5, %v102
    %v104 = vrot.slane %v15, %v103
    %v105 = vlaneseq
    %v106 = vshrl.u32 %v105, 7
    %v107 = vsub.s32 1, %v106
    %v108 = vrot.slane %v16, %v107
    %v109 = vlaneseq
    %v110 = vshrl.u32 %v109, 7
    %v111 = vsub.s32 5, %v110
    %v112 = vrot.slane %v16, %v111
    %v117 = vlaneseq
    %v118 = vshrl.u32 %v117, 7
    %v119 = vsub.s32 1, %v118
    %v120 = vrot.slane %v100, %v119
    %v121 = vlaneseq
    %v122 = vshrl.u32 %v121, 7
    %v123 = vsub.s32 1, %v122
    %v124 = vrot.slane %v104, %v123
    %v125 = vlaneseq
    %v126 = vshrl.u32 %v125, 7
    %v127 = vsub.s32 1, %v126
    %v128 = vrot.slane %v108, %v127
    %v129 = vlaneseq
    %v130 = vshrl.u32 %v129, 7
    %v131 = vsub.s32 1, %v130
    %v132 = vrot.slane %v112, %v131
    %v133 = vmul.f32 %v91, %v120
    %v134 = vmul.f32 %v91, %v124
    %v135 = vmul.f32 %v95, %v128
    %v136 = vmul.f32 %v95, %v132
    %v137 = vadd.f32 %v85, %v133
    %v138 = vadd.f32 %v86, %v134
    %v139 = vadd.f32 %v87, %v135
    %v140 = vadd.f32 %v88, %v136
    %141 = vset.pattern.permute.xlu0 2
    %142 = vperm.xlu0 %141, %v17
    %v143 = vpop.permute.xlu0 %142
    %145 = vset.pattern.permute.xlu0 2
    %146 = vperm.xlu0 %145, %v18
    %v147 = vpop.permute.xlu0 %146
    %v149 = vlaneseq
    %v150 = vshrl.u32 %v149, 7
    %v151 = vsub.s32 2, %v150
    %v152 = vrot.slane %v15, %v151
    %v153 = vlaneseq
    %v154 = vshrl.u32 %v153, 7
    %v155 = vsub.s32 6, %v154
    %v156 = vrot.slane %v15, %v155
    %v157 = vlaneseq
    %v158 = vshrl.u32 %v157, 7
    %v159 = vsub.s32 2, %v158
    %v160 = vrot.slane %v16, %v159
    %v161 = vlaneseq
    %v162 = vshrl.u32 %v161, 7
    %v163 = vsub.s32 6, %v162
    %v164 = vrot.slane %v16, %v163
    %v169 = vlaneseq
    %v170 = vshrl.u32 %v169, 7
    %v171 = vsub.s32 2, %v170
    %v172 = vrot.slane %v152, %v171
    %v173 = vlaneseq
    %v174 = vshrl.u32 %v173, 7
    %v175 = vsub.s32 2, %v174
    %v176 = vrot.slane %v156, %v175
    %v177 = vlaneseq
    %v178 = vshrl.u32 %v177, 7
    %v179 = vsub.s32 2, %v178
    %v180 = vrot.slane %v160, %v179
    %v181 = vlaneseq
    %v182 = vshrl.u32 %v181, 7
    %v183 = vsub.s32 2, %v182
    %v184 = vrot.slane %v164, %v183
    %v185 = vmul.f32 %v143, %v172
    %v186 = vmul.f32 %v143, %v176
    %v187 = vmul.f32 %v147, %v180
    %v188 = vmul.f32 %v147, %v184
    %v189 = vadd.f32 %v137, %v185
    %v190 = vadd.f32 %v138, %v186
    %v191 = vadd.f32 %v139, %v187
    %v192 = vadd.f32 %v140, %v188
    %193 = vset.pattern.permute.xlu0 3
    %194 = vperm.xlu0 %193, %v17
    %v195 = vpop.permute.xlu0 %194
    %197 = vset.pattern.permute.xlu0 3
    %198 = vperm.xlu0 %197, %v18
    %v199 = vpop.permute.xlu0 %198
    %v201 = vlaneseq
    %v202 = vshrl.u32 %v201, 7
    %v203 = vsub.s32 3, %v202
    %v204 = vrot.slane %v15, %v203
    %v205 = vlaneseq
    %v206 = vshrl.u32 %v205, 7
    %v207 = vsub.s32 7, %v206
    %v208 = vrot.slane %v15, %v207
    %v209 = vlaneseq
    %v210 = vshrl.u32 %v209, 7
    %v211 = vsub.s32 3, %v210
    %v212 = vrot.slane %v16, %v211
    %v213 = vlaneseq
    %v214 = vshrl.u32 %v213, 7
    %v215 = vsub.s32 7, %v214
    %v216 = vrot.slane %v16, %v215
    %v221 = vlaneseq
    %v222 = vshrl.u32 %v221, 7
    %v223 = vsub.s32 3, %v222
    %v224 = vrot.slane %v204, %v223
    %v225 = vlaneseq
    %v226 = vshrl.u32 %v225, 7
    %v227 = vsub.s32 3, %v226
    %v228 = vrot.slane %v208, %v227
    %v229 = vlaneseq
    %v230 = vshrl.u32 %v229, 7
    %v231 = vsub.s32 3, %v230
    %v232 = vrot.slane %v212, %v231
    %v233 = vlaneseq
    %v234 = vshrl.u32 %v233, 7
    %v235 = vsub.s32 3, %v234
    %v236 = vrot.slane %v216, %v235
    %v237 = vmul.f32 %v195, %v224
    %v238 = vmul.f32 %v195, %v228
    %v239 = vmul.f32 %v199, %v232
    %v240 = vmul.f32 %v199, %v236
    %v241 = vadd.f32 %v189, %v237
    %v242 = vadd.f32 %v190, %v238
    %v243 = vadd.f32 %v191, %v239
    %v244 = vadd.f32 %v192, %v240
    %245 = vst [vmem:[#allocation2] sm:$0xff] %v241
    %246 = vst [vmem:[#allocation2 + $0x8] sm:$0xff] %v242
    %247 = vst [vmem:[#allocation2 + $0x10] sm:$0xff] %v243
    %248 = vst [vmem:[#allocation2 + $0x18] sm:$0xff] %v244
    // Predicated region
    $region14: #{tpu_custom_call.1} parent=1 // pred_check
      _
    $region15: #{tpu_custom_call.1} parent=1 // pred_check_branch
      %250 = sbr.rel (0) target = $region17
    $region16: #{tpu_custom_call.1} parent=1 // pred_region
      %s252 = ssub.s32 512, 512
      %253 = vsyncadd [#allocation3], %s252
      %s254 = sshll.u32 [#allocation2], 4
      %s255 = int_to_ptr.vmem [resolvable:$true] %s254
      %260 = dma.vmem_to_hbm [thread:$0]  %s255, 512, %s3, [#allocation3], 256, 256, 16
    $region17: #{tpu_custom_call.1} parent=1 // pred_fallthru
      _
    // Predicated region
    $region18: #{tpu_custom_call.1} parent=1 // pred_check
      _
    $region19: #{tpu_custom_call.1} parent=1 // pred_check_branch
      %262 = sbr.rel (0) target = $region21
    $region20: #{tpu_custom_call.1} parent=1 // pred_region
      %263 = dma.done [#allocation3], 512
    $region21: #{tpu_custom_call.1} parent=1 // pred_fallthru
      _
    %264 = vsyncpa [#allocation3], 1

</llo_original>
